<compile_context>
chip_gen: v6e
topology: v6e:2x2x1
jax: 0.10.0
libtpu: 0.0.40
codegen_flags: <defaults>
</compile_context>

<pallas_src>
import jax
import jax.numpy as jnp
from jax.experimental import pallas as pl
from jax.experimental.pallas import tpu as pltpu

SELU_ALPHA = 1.6732632423543772848170429916717
SELU_SCALE = 1.0507009873554804934193349852946


def _round_up(n, m):
    return (n + m - 1) // m * m


def _selu(v):
    # Negative branch: alpha * (exp(v) - 1); exp goes to the EUP slot.
    # Clamp the exp argument so the (discarded) branch never overflows.
    neg = SELU_ALPHA * (jnp.exp(jnp.minimum(v, 0.0)) - 1.0)
    return SELU_SCALE * jnp.where(v > 0.0, v, neg)


def ode_solver_kernel(x_ref,
                      w1_ref, b1_ref,
                      w2_ref, b2_ref,
                      w3_ref, b3_ref,
                      w4_ref, b4_ref,
                      o_ref):
    x = x_ref[...]
    h = _selu(jnp.dot(x, w1_ref[...], preferred_element_type=jnp.float32)
              + b1_ref[...])
    h = _selu(jnp.dot(h, w2_ref[...], preferred_element_type=jnp.float32)
              + b2_ref[...])
    h = _selu(jnp.dot(h, w3_ref[...], preferred_element_type=jnp.float32)
              + b3_ref[...])
    # Final (n_hidden -> 1) projection as a lane reduction (XLU) instead of an
    # N=1 MXU matmul (saves a full MXU push+drain for 1 useful column).
    y = jnp.sum(h * w4_ref[...], axis=-1, keepdims=True) + b4_ref[...]
    o_ref[...] = y.astype(o_ref.dtype)


def ode_solver_forward(x, params, *, tile_b=512):
    """x: (batch, 2*steps+3) f32 -> (batch, 1) f32.

    params: (w1, b1, w2, b2, w3, b3, w4, b4) with weights already transposed
    to (in_features, out_features) and biases shaped (1, out_features).
    """
    w1, b1, w2, b2, w3, b3, w4, b4 = params
    batch, d_in = x.shape
    n_hidden = w1.shape[1]

    # One-time layout plumbing (trace-time, outside the hot kernel loop).
    w4_row = w4.reshape(1, n_hidden)      # (n_hidden, 1) -> (1, n_hidden) row
    b4_s = b4.reshape(1, 1)

    # Batch tiling: big tiles amortize the ~0.35us per-grid-step overhead;
    # tiny batches collapse to a single grid step.
    tile_b = max(8, min(tile_b, _round_up(batch, 8)))
    padded_batch = _round_up(batch, tile_b)
    grid = (padded_batch // tile_b,)

    xp = x if padded_batch == batch else jnp.pad(
        x, ((0, padded_batch - batch), (0, 0)))

    # Weights / biases: full-array blocks with a constant index_map -> DMA'd
    # once, then VMEM-resident across all grid steps.
    resident = lambda shape: pl.BlockSpec(shape, lambda i: (0, 0))

    out = pl.pallas_call(
        ode_solver_kernel,
        out_shape=jax.ShapeDtypeStruct((padded_batch, 1), jnp.float32),
        grid=grid,
        in_specs=[
            pl.BlockSpec((tile_b, d_in), lambda i: (i, 0)),      # x tile (pipelined)
            resident((d_in, n_hidden)), resident((1, n_hidden)),  # layer 1
            resident((n_hidden, n_hidden)), resident((1, n_hidden)),  # layer 2
            resident((n_hidden, n_hidden)), resident((1, n_hidden)),  # layer 3
            resident((1, n_hidden)), resident((1, 1)),            # predict
        ],
        out_specs=pl.BlockSpec((tile_b, 1), lambda i: (i, 0)),
        compiler_params=pltpu.CompilerParams(
            dimension_semantics=("parallel",)),   # megacore split on v7x
    )(xp, w1, b1, w2, b2, w3, b3, w4_row, b4_s)

    return out[:batch]


def init_params(key, steps, n_hidden):
    """Deterministic synthetic parameters (PyTorch-Linear init, transposed)."""
    d_in = 2 * steps + 3
    dims = [(d_in, n_hidden), (n_hidden, n_hidden),
            (n_hidden, n_hidden), (n_hidden, 1)]
    params = []
    for fi, fo in dims:
        kw, kb, key = jax.random.split(key, 3)
        bound = 1.0 / jnp.sqrt(fi)
        w = jax.random.uniform(kw, (fi, fo), jnp.float32, -bound, bound)
        b = jax.random.uniform(kb, (1, fo), jnp.float32, -bound, bound)
        params += [w, b]
    return tuple(params)


def reference_forward(x, params):
    w1, b1, w2, b2, w3, b3, w4, b4 = params
    h = jax.nn.selu(x @ w1 + b1)
    h = jax.nn.selu(h @ w2 + b2)
    h = jax.nn.selu(h @ w3 + b3)
    return h @ w4 + b4


if __name__ == "__main__":
    steps = 8
    n_hidden = 32
    batch = 8

    key = jax.random.PRNGKey(0)
    kx, kp = jax.random.split(key)
    x = jax.random.normal(kx, (batch, 2 * steps + 3), dtype=jnp.float32)
    params = init_params(kp, steps, n_hidden)

    out = ode_solver_forward(x, params)
    out = jax.block_until_ready(out)

    ref = reference_forward(x, params)
    assert out.shape == (batch, 1)
    assert jnp.allclose(out, ref, atol=1e-5, rtol=1e-5), "mismatch vs reference"

    print("KERNEL_OK")
</pallas_src>

<mosaic_0001>
module attributes {stable_mosaic.version = 11 : i64} {
  func.func @ode_solver_kernel(%arg0: i32, %arg1: memref<8x19xf32, #tpu.memory_space<vmem>>, %arg2: memref<19x32xf32, #tpu.memory_space<vmem>>, %arg3: memref<1x32xf32, #tpu.memory_space<vmem>>, %arg4: memref<32x32xf32, #tpu.memory_space<vmem>>, %arg5: memref<1x32xf32, #tpu.memory_space<vmem>>, %arg6: memref<32x32xf32, #tpu.memory_space<vmem>>, %arg7: memref<1x32xf32, #tpu.memory_space<vmem>>, %arg8: memref<1x32xf32, #tpu.memory_space<vmem>>, %arg9: memref<1x1xf32, #tpu.memory_space<vmem>>, %arg10: memref<8x1xf32, #tpu.memory_space<vmem>>) attributes {dimension_semantics = [#tpu.dimension_semantics<parallel>], iteration_bounds = array<i64: 1>, scalar_prefetch = 0 : i64, scratch_operands = 0 : i64, tpu.core_type = #tpu.core_type<tc>, window_params = [{transform_indices = @transform_0, window_bounds = array<i64: 8, 19>}, {pipeline_mode = #tpu.pipeline_mode<synchronous>, transform_indices = @transform_1, window_bounds = array<i64: 19, 32>}, {pipeline_mode = #tpu.pipeline_mode<synchronous>, transform_indices = @transform_2, window_bounds = array<i64: 1, 32>}, {pipeline_mode = #tpu.pipeline_mode<synchronous>, transform_indices = @transform_3, window_bounds = array<i64: 32, 32>}, {pipeline_mode = #tpu.pipeline_mode<synchronous>, transform_indices = @transform_4, window_bounds = array<i64: 1, 32>}, {pipeline_mode = #tpu.pipeline_mode<synchronous>, transform_indices = @transform_5, window_bounds = array<i64: 32, 32>}, {pipeline_mode = #tpu.pipeline_mode<synchronous>, transform_indices = @transform_6, window_bounds = array<i64: 1, 32>}, {pipeline_mode = #tpu.pipeline_mode<synchronous>, transform_indices = @transform_7, window_bounds = array<i64: 1, 32>}, {pipeline_mode = #tpu.pipeline_mode<synchronous>, transform_indices = @transform_8, window_bounds = array<i64: 1, 1>}, {transform_indices = @transform_9, window_bounds = array<i64: 8, 1>}]} {
    %c0 = arith.constant 0 : index
    %c0_0 = arith.constant 0 : index
    %0 = vector.load %arg1[%c0, %c0_0] : memref<8x19xf32, #tpu.memory_space<vmem>>, vector<8x19xf32>
    %c0_1 = arith.constant 0 : index
    %c0_2 = arith.constant 0 : index
    %1 = vector.load %arg2[%c0_1, %c0_2] : memref<19x32xf32, #tpu.memory_space<vmem>>, vector<19x32xf32>
    %cst = arith.constant dense<0.000000e+00> : vector<8x32xf32>
    %2 = tpu.matmul %0, %1, %cst {dimension_numbers = #tpu.dot_dimension_numbers<[1], [0], [0], [1], [0, 0, 1, 1], [], []>} : vector<8x19xf32>, vector<19x32xf32>, vector<8x32xf32> -> vector<8x32xf32>
    %c0_3 = arith.constant 0 : index
    %c0_4 = arith.constant 0 : index
    %3 = vector.load %arg3[%c0_3, %c0_4] : memref<1x32xf32, #tpu.memory_space<vmem>>, vector<1x32xf32>
    %4 = vector.broadcast %3 : vector<1x32xf32> to vector<8x32xf32>
    %5 = arith.addf %2, %4 : vector<8x32xf32>
    %cst_5 = arith.constant 0.000000e+00 : f32
    %6 = vector.broadcast %cst_5 : f32 to vector<8x32xf32>
    %7 = arith.minimumf %5, %6 : vector<8x32xf32>
    %8 = math.exp %7 : vector<8x32xf32>
    %cst_6 = arith.constant 1.000000e+00 : f32
    %9 = vector.broadcast %cst_6 : f32 to vector<8x32xf32>
    %10 = arith.subf %8, %9 : vector<8x32xf32>
    %cst_7 = arith.constant 1.67326319 : f32
    %11 = vector.broadcast %cst_7 : f32 to vector<8x32xf32>
    %12 = arith.mulf %11, %10 : vector<8x32xf32>
    %cst_8 = arith.constant 0.000000e+00 : f32
    %13 = vector.broadcast %cst_8 : f32 to vector<8x32xf32>
    %14 = arith.cmpf ogt, %5, %13 : vector<8x32xf32>
    %15 = arith.select %14, %5, %12 : vector<8x32xi1>, vector<8x32xf32>
    %cst_9 = arith.constant 1.05070102 : f32
    %16 = vector.broadcast %cst_9 : f32 to vector<8x32xf32>
    %17 = arith.mulf %16, %15 : vector<8x32xf32>
    %c0_10 = arith.constant 0 : index
    %c0_11 = arith.constant 0 : index
    %18 = vector.load %arg4[%c0_10, %c0_11] : memref<32x32xf32, #tpu.memory_space<vmem>>, vector<32x32xf32>
    %cst_12 = arith.constant dense<0.000000e+00> : vector<8x32xf32>
    %19 = tpu.matmul %17, %18, %cst_12 {dimension_numbers = #tpu.dot_dimension_numbers<[1], [0], [0], [1], [0, 0, 1, 1], [], []>} : vector<8x32xf32>, vector<32x32xf32>, vector<8x32xf32> -> vector<8x32xf32>
    %c0_13 = arith.constant 0 : index
    %c0_14 = arith.constant 0 : index
    %20 = vector.load %arg5[%c0_13, %c0_14] : memref<1x32xf32, #tpu.memory_space<vmem>>, vector<1x32xf32>
    %21 = vector.broadcast %20 : vector<1x32xf32> to vector<8x32xf32>
    %22 = arith.addf %19, %21 : vector<8x32xf32>
    %cst_15 = arith.constant 0.000000e+00 : f32
    %23 = vector.broadcast %cst_15 : f32 to vector<8x32xf32>
    %24 = arith.minimumf %22, %23 : vector<8x32xf32>
    %25 = math.exp %24 : vector<8x32xf32>
    %cst_16 = arith.constant 1.000000e+00 : f32
    %26 = vector.broadcast %cst_16 : f32 to vector<8x32xf32>
    %27 = arith.subf %25, %26 : vector<8x32xf32>
    %cst_17 = arith.constant 1.67326319 : f32
    %28 = vector.broadcast %cst_17 : f32 to vector<8x32xf32>
    %29 = arith.mulf %28, %27 : vector<8x32xf32>
    %cst_18 = arith.constant 0.000000e+00 : f32
    %30 = vector.broadcast %cst_18 : f32 to vector<8x32xf32>
    %31 = arith.cmpf ogt, %22, %30 : vector<8x32xf32>
    %32 = arith.select %31, %22, %29 : vector<8x32xi1>, vector<8x32xf32>
    %cst_19 = arith.constant 1.05070102 : f32
    %33 = vector.broadcast %cst_19 : f32 to vector<8x32xf32>
    %34 = arith.mulf %33, %32 : vector<8x32xf32>
    %c0_20 = arith.constant 0 : index
    %c0_21 = arith.constant 0 : index
    %35 = vector.load %arg6[%c0_20, %c0_21] : memref<32x32xf32, #tpu.memory_space<vmem>>, vector<32x32xf32>
    %cst_22 = arith.constant dense<0.000000e+00> : vector<8x32xf32>
    %36 = tpu.matmul %34, %35, %cst_22 {dimension_numbers = #tpu.dot_dimension_numbers<[1], [0], [0], [1], [0, 0, 1, 1], [], []>} : vector<8x32xf32>, vector<32x32xf32>, vector<8x32xf32> -> vector<8x32xf32>
    %c0_23 = arith.constant 0 : index
    %c0_24 = arith.constant 0 : index
    %37 = vector.load %arg7[%c0_23, %c0_24] : memref<1x32xf32, #tpu.memory_space<vmem>>, vector<1x32xf32>
    %38 = vector.broadcast %37 : vector<1x32xf32> to vector<8x32xf32>
    %39 = arith.addf %36, %38 : vector<8x32xf32>
    %cst_25 = arith.constant 0.000000e+00 : f32
    %40 = vector.broadcast %cst_25 : f32 to vector<8x32xf32>
    %41 = arith.minimumf %39, %40 : vector<8x32xf32>
    %42 = math.exp %41 : vector<8x32xf32>
    %cst_26 = arith.constant 1.000000e+00 : f32
    %43 = vector.broadcast %cst_26 : f32 to vector<8x32xf32>
    %44 = arith.subf %42, %43 : vector<8x32xf32>
    %cst_27 = arith.constant 1.67326319 : f32
    %45 = vector.broadcast %cst_27 : f32 to vector<8x32xf32>
    %46 = arith.mulf %45, %44 : vector<8x32xf32>
    %cst_28 = arith.constant 0.000000e+00 : f32
    %47 = vector.broadcast %cst_28 : f32 to vector<8x32xf32>
    %48 = arith.cmpf ogt, %39, %47 : vector<8x32xf32>
    %49 = arith.select %48, %39, %46 : vector<8x32xi1>, vector<8x32xf32>
    %cst_29 = arith.constant 1.05070102 : f32
    %50 = vector.broadcast %cst_29 : f32 to vector<8x32xf32>
    %51 = arith.mulf %50, %49 : vector<8x32xf32>
    %c0_30 = arith.constant 0 : index
    %c0_31 = arith.constant 0 : index
    %52 = vector.load %arg8[%c0_30, %c0_31] : memref<1x32xf32, #tpu.memory_space<vmem>>, vector<1x32xf32>
    %53 = vector.broadcast %52 : vector<1x32xf32> to vector<8x32xf32>
    %54 = arith.mulf %51, %53 : vector<8x32xf32>
    %cst_32 = arith.constant dense<0.000000e+00> : vector<8xf32>
    %55 = vector.multi_reduction <add>, %54, %cst_32 [1] : vector<8x32xf32> to vector<8xf32>
    %56 = vector.shape_cast %55 : vector<8xf32> to vector<8x1xf32>
    %c0_33 = arith.constant 0 : index
    %c0_34 = arith.constant 0 : index
    %57 = vector.load %arg9[%c0_33, %c0_34] : memref<1x1xf32, #tpu.memory_space<vmem>>, vector<1x1xf32>
    %58 = vector.broadcast %57 : vector<1x1xf32> to vector<8x1xf32>
    %59 = arith.addf %56, %58 : vector<8x1xf32>
    %c0_35 = arith.constant 0 : index
    %c0_36 = arith.constant 0 : index
    %60 = vector.load %arg10[%c0_35, %c0_36] : memref<8x1xf32, #tpu.memory_space<vmem>>, vector<8x1xf32>
    tpu.vector_store %arg10[%c0_35, %c0_36], %59 {strides = array<i32>} : memref<8x1xf32, #tpu.memory_space<vmem>>, vector<8x1xf32>,
    return
  }
  func.func @transform_0(%arg0: i32) -> (i32, i32) {
    %c0_i32 = arith.constant 0 : i32
    %c0_i32_0 = arith.constant 0 : i32
    return %arg0, %c0_i32 : i32, i32
  }
  func.func @transform_1(%arg0: i32) -> (i32, i32) {
    %c0_i32 = arith.constant 0 : i32
    %c0_i32_0 = arith.constant 0 : i32
    %c0_i32_1 = arith.constant 0 : i32
    return %c0_i32, %c0_i32_0 : i32, i32
  }
  func.func @transform_2(%arg0: i32) -> (i32, i32) {
    %c0_i32 = arith.constant 0 : i32
    %c0_i32_0 = arith.constant 0 : i32
    %c0_i32_1 = arith.constant 0 : i32
    return %c0_i32, %c0_i32_0 : i32, i32
  }
  func.func @transform_3(%arg0: i32) -> (i32, i32) {
    %c0_i32 = arith.constant 0 : i32
    %c0_i32_0 = arith.constant 0 : i32
    %c0_i32_1 = arith.constant 0 : i32
    return %c0_i32, %c0_i32_0 : i32, i32
  }
  func.func @transform_4(%arg0: i32) -> (i32, i32) {
    %c0_i32 = arith.constant 0 : i32
    %c0_i32_0 = arith.constant 0 : i32
    %c0_i32_1 = arith.constant 0 : i32
    return %c0_i32, %c0_i32_0 : i32, i32
  }
  func.func @transform_5(%arg0: i32) -> (i32, i32) {
    %c0_i32 = arith.constant 0 : i32
    %c0_i32_0 = arith.constant 0 : i32
    %c0_i32_1 = arith.constant 0 : i32
    return %c0_i32, %c0_i32_0 : i32, i32
  }
  func.func @transform_6(%arg0: i32) -> (i32, i32) {
    %c0_i32 = arith.constant 0 : i32
    %c0_i32_0 = arith.constant 0 : i32
    %c0_i32_1 = arith.constant 0 : i32
    return %c0_i32, %c0_i32_0 : i32, i32
  }
  func.func @transform_7(%arg0: i32) -> (i32, i32) {
    %c0_i32 = arith.constant 0 : i32
    %c0_i32_0 = arith.constant 0 : i32
    %c0_i32_1 = arith.constant 0 : i32
    return %c0_i32, %c0_i32_0 : i32, i32
  }
  func.func @transform_8(%arg0: i32) -> (i32, i32) {
    %c0_i32 = arith.constant 0 : i32
    %c0_i32_0 = arith.constant 0 : i32
    %c0_i32_1 = arith.constant 0 : i32
    return %c0_i32, %c0_i32_0 : i32, i32
  }
  func.func @transform_9(%arg0: i32) -> (i32, i32) {
    %c0_i32 = arith.constant 0 : i32
    %c0_i32_0 = arith.constant 0 : i32
    return %arg0, %c0_i32 : i32, i32
  }
}

</mosaic_0001>

<llo_original>
// kernel: tpu_custom_call.1
$region0: #{tpu_custom_call.1}
  #allocation0 [shape = 'u32[]', space=smem, size = 0x4, offset = 0x4, fixed_abs, tag = 'smem constant byte address 0x4 - core index']
  #allocation1 [shape = 'u32[144,128]{1,0:T(1,128)}', space=vmem, size = 0x12000, scoped, tag = 'internal scratch']
  #allocation2 [shape = 'f32[1,1]{1,0:T(1,128)S(1)}', space=vmem, size = 0x200, scoped, tag = 'scoped memory for tpu_custom_call.1']
  %s0 = inlined_call_operand.hbm [shape: f32[8,19], index: 0, kind: input, shape index: {}]
  %s1 = inlined_call_operand.hbm [shape: f32[19,32], index: 1, kind: input, shape index: {}]
  %s2 = inlined_call_operand.vmem [shape: f32[1,32], index: 2, kind: input, shape index: {}]
  %s3 = inlined_call_operand.hbm [shape: f32[32,32], index: 3, kind: input, shape index: {}]
  %s4 = inlined_call_operand.vmem [shape: f32[1,32], index: 4, kind: input, shape index: {}]
  %s5 = inlined_call_operand.hbm [shape: f32[32,32], index: 5, kind: input, shape index: {}]
  %s6 = inlined_call_operand.vmem [shape: f32[1,32], index: 6, kind: input, shape index: {}]
  %s7 = inlined_call_operand.vmem [shape: f32[1,32], index: 7, kind: input, shape index: {}]
  %s8 = inlined_call_operand.<no memory space> [shape: f32[1,1], index: 8, kind: input, shape index: {}]
  %s9 = inlined_call_operand.vmem [shape: f32[8,1], index: 9, kind: output, shape index: {}]
  %s10 = sld [smem:[#allocation0]]
  $region62: #{tpu_custom_call.1} parent=0
    _
  %s12 = ssub.s32 1, %s10
  %s13 = scalar_select 0, %s12, %s10
  %v14 = vstv %s8
  %15 = vst [vmem:[#allocation2] sm:$0x1] %v14
  $region1: #{tpu_custom_call.1} parent=0
    #allocation3 [shape = 'u8[4096]{0}', space=vmem, size = 0x1000, scoped, tag = 'input window, operand 0, single buffered']
    #allocation4 [shape = 's32[1]{0}', space=sflag, size = 0x4, scoped, tag = 'scoped memory for tpu_custom_call.1']
    #allocation5 [shape = 'u8[12288]{0}', space=vmem, size = 0x3000, scoped, tag = 'input window, operand 1, single buffered']
    #allocation6 [shape = 's32[1]{0}', space=sflag, size = 0x4, scoped, tag = 'scoped memory for tpu_custom_call.1']
    #allocation7 [shape = 'u8[16384]{0}', space=vmem, size = 0x4000, scoped, tag = 'input window, operand 3, single buffered']
    #allocation8 [shape = 'u8[16384]{0}', space=vmem, size = 0x4000, scoped, tag = 'input window, operand 5, single buffered']
    #allocation9 [shape = 's32[1]{0}', space=sflag, size = 0x4, scoped, tag = 'scoped memory for tpu_custom_call.1']
    %16 = vsyncpa [#allocation4], 0
    %17 = vsyncpa [#allocation6], 0
    %18 = vsyncpa [#allocation9], 0
    // Predicated region
    $region2: #{tpu_custom_call.1} parent=1 // pred_check
      _
    $region3: #{tpu_custom_call.1} parent=1 // pred_check_branch
      %20 = sbr.rel (0) target = $region5
    $region4: #{tpu_custom_call.1} parent=1 // pred_region
      %s22 = ssub.s32 128, 128
      %23 = vsyncadd [#allocation4], %s22
      %s25 = sshll.u32 [#allocation3], 4
      %s26 = int_to_ptr.vmem [resolvable:$true] %s25
      %28 = dma.hbm_to_vmem [thread:$0]  %s0, 128, %s26, [#allocation4]
    $region5: #{tpu_custom_call.1} parent=1 // pred_fallthru
      _
    // Predicated region
    $region6: #{tpu_custom_call.1} parent=1 // pred_check
      _
    $region7: #{tpu_custom_call.1} parent=1 // pred_check_branch
      %30 = sbr.rel (0) target = $region9
    $region8: #{tpu_custom_call.1} parent=1 // pred_region
      %s32 = ssub.s32 384, 384
      %33 = vsyncadd [#allocation6], %s32
      %s34 = sshll.u32 [#allocation5], 4
      %s35 = int_to_ptr.vmem [resolvable:$true] %s34
      %40 = dma.hbm_to_vmem [thread:$0]  %s1, 384, %s35, [#allocation6], 128, 128, 8
    $region9: #{tpu_custom_call.1} parent=1 // pred_fallthru
      _
    // Predicated region
    $region10: #{tpu_custom_call.1} parent=1 // pred_check
      _
    $region11: #{tpu_custom_call.1} parent=1 // pred_check_branch
      %42 = sbr.rel (0) target = $region13
    $region12: #{tpu_custom_call.1} parent=1 // pred_region
      _
    $region13: #{tpu_custom_call.1} parent=1 // pred_fallthru
      _
    // Predicated region
    $region14: #{tpu_custom_call.1} parent=1 // pred_check
      _
    $region15: #{tpu_custom_call.1} parent=1 // pred_check_branch
      %44 = sbr.rel (0) target = $region17
    $region16: #{tpu_custom_call.1} parent=1 // pred_region
      %s46 = ssub.s32 512, 512
      %47 = vsyncadd [#allocation6], %s46
      %s48 = sshll.u32 [#allocation7], 4
      %s49 = int_to_ptr.vmem [resolvable:$true] %s48
      %54 = dma.hbm_to_vmem [thread:$0]  %s3, 512, %s49, [#allocation6], 128, 128, 8
    $region17: #{tpu_custom_call.1} parent=1 // pred_fallthru
      _
    // Predicated region
    $region18: #{tpu_custom_call.1} parent=1 // pred_check
      _
    $region19: #{tpu_custom_call.1} parent=1 // pred_check_branch
      %56 = sbr.rel (0) target = $region21
    $region20: #{tpu_custom_call.1} parent=1 // pred_region
      _
    $region21: #{tpu_custom_call.1} parent=1 // pred_fallthru
      _
    // Predicated region
    $region22: #{tpu_custom_call.1} parent=1 // pred_check
      _
    $region23: #{tpu_custom_call.1} parent=1 // pred_check_branch
      %58 = sbr.rel (0) target = $region25
    $region24: #{tpu_custom_call.1} parent=1 // pred_region
      %s60 = ssub.s32 512, 512
      %61 = vsyncadd [#allocation9], %s60
      %s62 = sshll.u32 [#allocation8], 4
      %s63 = int_to_ptr.vmem [resolvable:$true] %s62
      %68 = dma.hbm_to_vmem [thread:$0]  %s5, 512, %s63, [#allocation9], 128, 128, 8
    $region25: #{tpu_custom_call.1} parent=1 // pred_fallthru
      _
    // Predicated region
    $region26: #{tpu_custom_call.1} parent=1 // pred_check
      _
    $region27: #{tpu_custom_call.1} parent=1 // pred_check_branch
      %70 = sbr.rel (0) target = $region29
    $region28: #{tpu_custom_call.1} parent=1 // pred_region
      _
    $region29: #{tpu_custom_call.1} parent=1 // pred_fallthru
      _
    // Predicated region
    $region30: #{tpu_custom_call.1} parent=1 // pred_check
      _
    $region31: #{tpu_custom_call.1} parent=1 // pred_check_branch
      %72 = sbr.rel (0) target = $region33
    $region32: #{tpu_custom_call.1} parent=1 // pred_region
      _
    $region33: #{tpu_custom_call.1} parent=1 // pred_fallthru
      _
    // Predicated region
    $region34: #{tpu_custom_call.1} parent=1 // pred_check
      _
    $region35: #{tpu_custom_call.1} parent=1 // pred_check_branch
      %74 = sbr.rel (0) target = $region37
    $region36: #{tpu_custom_call.1} parent=1 // pred_region
      _
    $region37: #{tpu_custom_call.1} parent=1 // pred_fallthru
      _
    // Predicated region
    $region38: #{tpu_custom_call.1} parent=1 // pred_check
      _
    $region39: #{tpu_custom_call.1} parent=1 // pred_check_branch
      %76 = sbr.rel (0) target = $region41
    $region40: #{tpu_custom_call.1} parent=1 // pred_region
      %77 = dma.done [#allocation4], 128
    $region41: #{tpu_custom_call.1} parent=1 // pred_fallthru
      _
    // Predicated region
    $region42: #{tpu_custom_call.1} parent=1 // pred_check
      _
    $region43: #{tpu_custom_call.1} parent=1 // pred_check_branch
      %79 = sbr.rel (0) target = $region45
    $region44: #{tpu_custom_call.1} parent=1 // pred_region
      %80 = dma.done [#allocation6], 384
    $region45: #{tpu_custom_call.1} parent=1 // pred_fallthru
      _
    // Predicated region
    $region46: #{tpu_custom_call.1} parent=1 // pred_check
      _
    $region47: #{tpu_custom_call.1} parent=1 // pred_check_branch
      %82 = sbr.rel (0) target = $region49
    $region48: #{tpu_custom_call.1} parent=1 // pred_region
      %83 = dma.done [#allocation6], 512
    $region49: #{tpu_custom_call.1} parent=1 // pred_fallthru
      _
    // Predicated region
    $region50: #{tpu_custom_call.1} parent=1 // pred_check
      _
    $region51: #{tpu_custom_call.1} parent=1 // pred_check_branch
      %85 = sbr.rel (0) target = $region53
    $region52: #{tpu_custom_call.1} parent=1 // pred_region
      %86 = dma.done [#allocation9], 512
    $region53: #{tpu_custom_call.1} parent=1 // pred_fallthru
      _
    %v87 = vld [vmem:[#allocation3] sm:$0xff]
    %v88 = vld [vmem:[#allocation5] sm:$0xff]
    %v89 = vld [vmem:[#allocation5 + $0x8] sm:$0xff]
    %v90 = vld [vmem:[#allocation5 + $0x10] sm:$0x7]
    %v91 = vld [vmem:[%s2] sm:$0x1]
    %v93 = vlaneseq
    %v94 = vshrl.u32 %v93, 7
    %v95 = vsub.s32 0, %v94
    %v96 = vrot.slane %v91, %v95
    %vm98 = vcmask 154624
    %v100 = vsel %vm98, %v87, 0
    %vm102 = vcmask 1042432
    %v104 = vsel %vm102, %v90, 0
    %106 = vmatprep.subr.mxu0 0.0
    %107 = vmatpush1.msra.mxu0 0.0
    %108 = vmatprep.subr.mxu0 0.0
    %109 = vmatpush1.msra.mxu0 0.0
    %110 = vmatprep.subr.mxu0 0.0
    %111 = vmatpush1.msra.mxu0 0.0
    %112 = vmatprep.subr.mxu0 0.0
    %113 = vmatpush1.msra.mxu0 0.0
    %114 = vmatprep.subr.mxu0 0.0
    %115 = vmatpush1.msra.mxu0 0.0
    %116 = vmatprep.subr.mxu0 0.0
    %117 = vmatpush1.msra.mxu0 0.0
    %118 = vmatprep.subr.mxu0 0.0
    %119 = vmatpush1.msra.mxu0 0.0
    %120 = vmatprep.subr.mxu0 0.0
    %121 = vmatpush1.msra.mxu0 0.0
    %122 = vmatprep.subr.mxu0 0.0
    %123 = vmatpush1.msra.mxu0 0.0
    %124 = vmatprep.subr.mxu0 0.0
    %125 = vmatpush1.msra.mxu0 0.0
    %126 = vmatprep.subr.mxu0 0.0
    %127 = vmatpush1.msra.mxu0 0.0
    %128 = vmatprep.subr.mxu0 0.0
    %129 = vmatpush1.msra.mxu0 0.0
    %130 = vmatprep.subr.mxu0 0.0
    %131 = vmatpush1.msra.mxu0 0.0
    %132 = vmatprep.subr.mxu0 0.0
    %133 = vmatpush1.msra.mxu0 %v104
    %134 = vmatprep.subr.mxu0 0.0
    %135 = vmatpush1.msra.mxu0 %v89
    %136 = vmatprep.subr.mxu0 0.0
    %137 = vmatpush1.msra.mxu0 %v88
    %138 = vmatprep.subr.mxu0 0.0
    %139 = vmatpush2.msra.mxu0 0.0
    %140 = vmatprep.subr.mxu0 0.0
    %141 = vmatpush2.msra.mxu0 0.0
    %142 = vmatprep.subr.mxu0 0.0
    %143 = vmatpush2.msra.mxu0 0.0
    %144 = vmatprep.subr.mxu0 0.0
    %145 = vmatpush2.msra.mxu0 0.0
    %146 = vmatprep.subr.mxu0 0.0
    %147 = vmatpush2.msra.mxu0 0.0
    %148 = vmatprep.subr.mxu0 0.0
    %149 = vmatpush2.msra.mxu0 0.0
    %150 = vmatprep.subr.mxu0 0.0
    %151 = vmatpush2.msra.mxu0 0.0
    %152 = vmatprep.subr.mxu0 0.0
    %153 = vmatpush2.msra.mxu0 0.0
    %154 = vmatprep.subr.mxu0 0.0
    %155 = vmatpush2.msra.mxu0 0.0
    %156 = vmatprep.subr.mxu0 0.0
    %157 = vmatpush2.msra.mxu0 0.0
    %158 = vmatprep.subr.mxu0 0.0
    %159 = vmatpush2.msra.mxu0 0.0
    %160 = vmatprep.subr.mxu0 0.0
    %161 = vmatpush2.msra.mxu0 0.0
    %162 = vmatprep.subr.mxu0 0.0
    %163 = vmatpush2.msra.mxu0 0.0
    %164 = vmatprep.subr.mxu0 0.0
    %165 = vmatpush2.msra.mxu0 0.0
    %166 = vmatprep.subr.mxu0 0.0
    %167 = vmatpush2.msra.mxu0 0.0
    %168 = vmatprep.subr.mxu0 0.0
    %169 = vmatpush2.msra.mxu0 0.0
    %170 = vmatprep.mubr.f32.mxu0 0.0
    %171 = vmatmul.mubr.f32.gmra.mxu0 %v100
    %v172 = vpop.f32.mrf.mxu0
    %v173 = vadd.f32 %v96, %v172
    %v174 = vpop.f32.mrf.mxu0
    %175 = vdwg.mxu0
    %v176 = vmin.f32 %v173, 0.0
    %v177 = vmul.f32 %v176, 1.442695
    %v178 = vpow.pop %v177
    %v179 = vsub.f32 %v178, 1.0
    %v180 = vmul.f32 %v179, 1.6732632
    %vm181 = vcmp.gt.f32.partialorder %v173, 0.0
    %v182 = vsel %vm181, %v173, %v180
    %v183 = vmul.f32 %v182, 1.050701
    %v184 = vld [vmem:[#allocation7] sm:$0xff]
    %v185 = vld [vmem:[#allocation7 + $0x8] sm:$0xff]
    %v186 = vld [vmem:[#allocation7 + $0x10] sm:$0xff]
    %v187 = vld [vmem:[#allocation7 + $0x18] sm:$0xff]
    %v188 = vld [vmem:[%s4] sm:$0x1]
    %v190 = vlaneseq
    %v191 = vshrl.u32 %v190, 7
    %v192 = vsub.s32 0, %v191
    %v193 = vrot.slane %v188, %v192
    %vm195 = vcmask 261120
    %v197 = vsel %vm195, %v183, 0
    %199 = vmatprep.subr.mxu0 0.0
    %200 = vmatpush1.msra.mxu0 0.0
    %201 = vmatprep.subr.mxu0 0.0
    %202 = vmatpush1.msra.mxu0 0.0
    %203 = vmatprep.subr.mxu0 0.0
    %204 = vmatpush1.msra.mxu0 0.0
    %205 = vmatprep.subr.mxu0 0.0
    %206 = vmatpush1.msra.mxu0 0.0
    %207 = vmatprep.subr.mxu0 0.0
    %208 = vmatpush1.msra.mxu0 0.0
    %209 = vmatprep.subr.mxu0 0.0
    %210 = vmatpush1.msra.mxu0 0.0
    %211 = vmatprep.subr.mxu0 0.0
    %212 = vmatpush1.msra.mxu0 0.0
    %213 = vmatprep.subr.mxu0 0.0
    %214 = vmatpush1.msra.mxu0 0.0
    %215 = vmatprep.subr.mxu0 0.0
    %216 = vmatpush1.msra.mxu0 0.0
    %217 = vmatprep.subr.mxu0 0.0
    %218 = vmatpush1.msra.mxu0 0.0
    %219 = vmatprep.subr.mxu0 0.0
    %220 = vmatpush1.msra.mxu0 0.0
    %221 = vmatprep.subr.mxu0 0.0
    %222 = vmatpush1.msra.mxu0 0.0
    %223 = vmatprep.subr.mxu0 0.0
    %224 = vmatpush1.msra.mxu0 %v187
    %225 = vmatprep.subr.mxu0 0.0
    %226 = vmatpush1.msra.mxu0 %v186
    %227 = vmatprep.subr.mxu0 0.0
    %228 = vmatpush1.msra.mxu0 %v185
    %229 = vmatprep.subr.mxu0 0.0
    %230 = vmatpush1.msra.mxu0 %v184
    %231 = vmatprep.subr.mxu0 0.0
    %232 = vmatpush2.msra.mxu0 0.0
    %233 = vmatprep.subr.mxu0 0.0
    %234 = vmatpush2.msra.mxu0 0.0
    %235 = vmatprep.subr.mxu0 0.0
    %236 = vmatpush2.msra.mxu0 0.0
    %237 = vmatprep.subr.mxu0 0.0
    %238 = vmatpush2.msra.mxu0 0.0
    %239 = vmatprep.subr.mxu0 0.0
    %240 = vmatpush2.msra.mxu0 0.0
    %241 = vmatprep.subr.mxu0 0.0
    %242 = vmatpush2.msra.mxu0 0.0
    %243 = vmatprep.subr.mxu0 0.0
    %244 = vmatpush2.msra.mxu0 0.0
    %245 = vmatprep.subr.mxu0 0.0
    %246 = vmatpush2.msra.mxu0 0.0
    %247 = vmatprep.subr.mxu0 0.0
    %248 = vmatpush2.msra.mxu0 0.0
    %249 = vmatprep.subr.mxu0 0.0
    %250 = vmatpush2.msra.mxu0 0.0
    %251 = vmatprep.subr.mxu0 0.0
    %252 = vmatpush2.msra.mxu0 0.0
    %253 = vmatprep.subr.mxu0 0.0
    %254 = vmatpush2.msra.mxu0 0.0
    %255 = vmatprep.subr.mxu0 0.0
    %256 = vmatpush2.msra.mxu0 0.0
    %257 = vmatprep.subr.mxu0 0.0
    %258 = vmatpush2.msra.mxu0 0.0
    %259 = vmatprep.subr.mxu0 0.0
    %260 = vmatpush2.msra.mxu0 0.0
    %261 = vmatprep.subr.mxu0 0.0
    %262 = vmatpush2.msra.mxu0 0.0
    %263 = vmatprep.mubr.f32.mxu0 0.0
    %264 = vmatmul.mubr.f32.gmra.mxu0 %v197
    %v265 = vpop.f32.mrf.mxu0
    %v266 = vadd.f32 %v193, %v265
    %v267 = vpop.f32.mrf.mxu0
    %268 = vdwg.mxu0
    %v269 = vmin.f32 %v266, 0.0
    %v270 = vmul.f32 %v269, 1.442695
    %v271 = vpow.pop %v270
    %v272 = vsub.f32 %v271, 1.0
    %v273 = vmul.f32 %v272, 1.6732632
    %vm274 = vcmp.gt.f32.partialorder %v266, 0.0
    %v275 = vsel %vm274, %v266, %v273
    %v276 = vmul.f32 %v275, 1.050701
    %v277 = vld [vmem:[#allocation8] sm:$0xff]
    %v278 = vld [vmem:[#allocation8 + $0x8] sm:$0xff]
    %v279 = vld [vmem:[#allocation8 + $0x10] sm:$0xff]
    %v280 = vld [vmem:[#allocation8 + $0x18] sm:$0xff]
    %v281 = vld [vmem:[%s6] sm:$0x1]
    %v283 = vlaneseq
    %v284 = vshrl.u32 %v283, 7
    %v285 = vsub.s32 0, %v284
    %v286 = vrot.slane %v281, %v285
    %v289 = vsel %vm195, %v276, 0
    %291 = vmatprep.subr.mxu0 0.0
    %292 = vmatpush1.msra.mxu0 0.0
    %293 = vmatprep.subr.mxu0 0.0
    %294 = vmatpush1.msra.mxu0 0.0
    %295 = vmatprep.subr.mxu0 0.0
    %296 = vmatpush1.msra.mxu0 0.0
    %297 = vmatprep.subr.mxu0 0.0
    %298 = vmatpush1.msra.mxu0 0.0
    %299 = vmatprep.subr.mxu0 0.0
    %300 = vmatpush1.msra.mxu0 0.0
    %301 = vmatprep.subr.mxu0 0.0
    %302 = vmatpush1.msra.mxu0 0.0
    %303 = vmatprep.subr.mxu0 0.0
    %304 = vmatpush1.msra.mxu0 0.0
    %305 = vmatprep.subr.mxu0 0.0
    %306 = vmatpush1.msra.mxu0 0.0
    %307 = vmatprep.subr.mxu0 0.0
    %308 = vmatpush1.msra.mxu0 0.0
    %309 = vmatprep.subr.mxu0 0.0
    %310 = vmatpush1.msra.mxu0 0.0
    %311 = vmatprep.subr.mxu0 0.0
    %312 = vmatpush1.msra.mxu0 0.0
    %313 = vmatprep.subr.mxu0 0.0
    %314 = vmatpush1.msra.mxu0 0.0
    %315 = vmatprep.subr.mxu0 0.0
    %316 = vmatpush1.msra.mxu0 %v280
    %317 = vmatprep.subr.mxu0 0.0
    %318 = vmatpush1.msra.mxu0 %v279
    %319 = vmatprep.subr.mxu0 0.0
    %320 = vmatpush1.msra.mxu0 %v278
    %321 = vmatprep.subr.mxu0 0.0
    %322 = vmatpush1.msra.mxu0 %v277
    %323 = vmatprep.subr.mxu0 0.0
    %324 = vmatpush2.msra.mxu0 0.0
    %325 = vmatprep.subr.mxu0 0.0
    %326 = vmatpush2.msra.mxu0 0.0
    %327 = vmatprep.subr.mxu0 0.0
    %328 = vmatpush2.msra.mxu0 0.0
    %329 = vmatprep.subr.mxu0 0.0
    %330 = vmatpush2.msra.mxu0 0.0
    %331 = vmatprep.subr.mxu0 0.0
    %332 = vmatpush2.msra.mxu0 0.0
    %333 = vmatprep.subr.mxu0 0.0
    %334 = vmatpush2.msra.mxu0 0.0
    %335 = vmatprep.subr.mxu0 0.0
    %336 = vmatpush2.msra.mxu0 0.0
    %337 = vmatprep.subr.mxu0 0.0
    %338 = vmatpush2.msra.mxu0 0.0
    %339 = vmatprep.subr.mxu0 0.0
    %340 = vmatpush2.msra.mxu0 0.0
    %341 = vmatprep.subr.mxu0 0.0
    %342 = vmatpush2.msra.mxu0 0.0
    %343 = vmatprep.subr.mxu0 0.0
    %344 = vmatpush2.msra.mxu0 0.0
    %345 = vmatprep.subr.mxu0 0.0
    %346 = vmatpush2.msra.mxu0 0.0
    %347 = vmatprep.subr.mxu0 0.0
    %348 = vmatpush2.msra.mxu0 0.0
    %349 = vmatprep.subr.mxu0 0.0
    %350 = vmatpush2.msra.mxu0 0.0
    %351 = vmatprep.subr.mxu0 0.0
    %352 = vmatpush2.msra.mxu0 0.0
    %353 = vmatprep.subr.mxu0 0.0
    %354 = vmatpush2.msra.mxu0 0.0
    %355 = vmatprep.mubr.f32.mxu0 0.0
    %356 = vmatmul.mubr.f32.gmra.mxu0 %v289
    %v357 = vpop.f32.mrf.mxu0
    %v358 = vadd.f32 %v286, %v357
    %v359 = vpop.f32.mrf.mxu0
    %360 = vdwg.mxu0
    %v361 = vmin.f32 %v358, 0.0
    %v362 = vmul.f32 %v361, 1.442695
    %v363 = vpow.pop %v362
    %v364 = vsub.f32 %v363, 1.0
    %v365 = vmul.f32 %v364, 1.6732632
    %vm366 = vcmp.gt.f32.partialorder %v358, 0.0
    %v367 = vsel %vm366, %v358, %v365
    %v368 = vmul.f32 %v367, 1.050701
    %v369 = vld [vmem:[%s7] sm:$0x1]
    %v371 = vlaneseq
    %v372 = vshrl.u32 %v371, 7
    %v373 = vsub.s32 0, %v372
    %v374 = vrot.slane %v369, %v373
    %v376 = vmul.f32 %v368, %v374
    %v377 = vsel %vm195, %v376, 0.0
    %378 = vadd.xlane.f32.xlu0 %v377
    %v379 = vpop.xlane.xlu0 %378
    %v380 = vld [vmem:[#allocation2] sm:$0x1]
    %v382 = vlaneseq
    %v383 = vshrl.u32 %v382, 7
    %v384 = vsub.s32 0, %v383
    %v385 = vrot.slane %v380, %v384
    %v387 = vadd.f32 %v379, %v385
    %vm388 = vcmask 7168
    %389 = vst.msk [vmem:[%s9] sm:$0xff] %vm388, %v387
    // Predicated region
    $region54: #{tpu_custom_call.1} parent=1 // pred_check
      _
    $region55: #{tpu_custom_call.1} parent=1 // pred_check_branch
      %391 = sbr.rel (0) target = $region57
    $region56: #{tpu_custom_call.1} parent=1 // pred_region
      _
    $region57: #{tpu_custom_call.1} parent=1 // pred_fallthru
      _
    // Predicated region
    $region58: #{tpu_custom_call.1} parent=1 // pred_check
      _
    $region59: #{tpu_custom_call.1} parent=1 // pred_check_branch
      %393 = sbr.rel (0) target = $region61
    $region60: #{tpu_custom_call.1} parent=1 // pred_region
      _
    $region61: #{tpu_custom_call.1} parent=1 // pred_fallthru
      _
    %394 = vsyncpa [#allocation4], 1
    %395 = vsyncpa [#allocation6], 1
    %396 = vsyncpa [#allocation9], 1

</llo_original>
